<compile_context>
chip_gen: v5e
topology: v5e:2x2
jax: 0.10.0
libtpu: 0.0.40
codegen_flags: <defaults>
</compile_context>

<pallas_src>
import functools

import jax
import jax.numpy as jnp
from jax.experimental import pallas as pl
from jax.experimental.pallas import tpu as pltpu


def _info_kernel(x_ref, w_ref, b_ref, *rest, apply_dropout):
    """One (tm, tn) output tile: y = relu(x @ W^T + b) [* dropout mask]."""
    if apply_dropout:
        m_ref, o_ref = rest
    else:
        (o_ref,) = rest

    # x_ref: (tm, K), w_ref: (tn, K) in native (out, in) layout.
    # Contract K on both operands -> (tm, tn); MXU handles either orientation.
    y = jax.lax.dot_general(
        x_ref[...], w_ref[...],
        dimension_numbers=(((1,), (1,)), ((), ())),
        preferred_element_type=jnp.float32,
    )
    y = y + b_ref[...]            # bias (1, tn) broadcasts over batch rows
    y = jnp.maximum(y, 0.0)       # ReLU
    if apply_dropout:
        # m_ref holds 0.0 (dropped) or 1/(1-p) (kept): inverted dropout.
        y = y * m_ref[...]
    o_ref[...] = y.astype(o_ref.dtype)


def info_forward(x, weight, bias, *, dropout_rate=0.5, training=False,
                 key=None, block_batch=256, block_n=256, use_bf16=False):
    """Pallas implementation of Info.forward (use_bn=False path).

    x:      (B, D)  float32
    weight: (D, D)  float32, PyTorch nn.Linear layout (out_features, in_features)
    bias:   (D,)    float32
    """
    # TODO(synk): use_bn=True (BatchNorm1d between Linear and ReLU) not implemented.
    B, K = x.shape
    N, Kw = weight.shape
    assert Kw == K and bias.shape == (N,)

    apply_dropout = bool(training) and float(dropout_rate) > 0.0
    if apply_dropout and float(dropout_rate) >= 1.0:
        # nn.Dropout(p=1.0) zeroes everything in training mode.
        return jnp.zeros((B, N), dtype=x.dtype)

    # Tile sizes: as large as the arrays allow, aligned to the (8, 128) vreg
    # tiling when they do not cover the full extent.
    tm = min(block_batch, B)
    if tm < B:
        tm = max(8, (tm // 8) * 8)
    tn = min(block_n, N)
    if tn < N:
        tn = max(128, (tn // 128) * 128)

    grid = (pl.cdiv(B, tm), pl.cdiv(N, tn))

    if use_bf16:
        # bf16 operands ~2-3x MXU throughput on v6e/v7x; accumulation stays f32.
        x_in = x.astype(jnp.bfloat16)
        w_in = weight.astype(jnp.bfloat16)
    else:
        x_in = x
        w_in = weight
    b2d = bias.reshape(1, N).astype(jnp.float32)

    in_specs = [
        pl.BlockSpec((tm, K), lambda i, j: (i, 0)),    # x batch tile (full K)
        pl.BlockSpec((tn, K), lambda i, j: (j, 0)),    # weight N-tile, native layout
        pl.BlockSpec((1, tn), lambda i, j: (0, j)),    # bias slice
    ]
    inputs = [x_in, w_in, b2d]

    if apply_dropout:
        if key is None:
            key = jax.random.PRNGKey(0)
        p = float(dropout_rate)
        keep = jax.random.bernoulli(key, 1.0 - p, (B, N))
        # 0.0 where dropped, 1/(1-p) where kept (inverted dropout scaling).
        mask = keep.astype(jnp.float32) * jnp.float32(1.0 / (1.0 - p))
        in_specs.append(pl.BlockSpec((tm, tn), lambda i, j: (i, j)))
        inputs.append(mask)

    kernel = functools.partial(_info_kernel, apply_dropout=apply_dropout)

    bytes_accessed = (B * K + N * K + N + B * N) * 4
    if apply_dropout:
        bytes_accessed += B * N * 4

    return pl.pallas_call(
        kernel,
        out_shape=jax.ShapeDtypeStruct((B, N), x.dtype),
        grid_spec=pltpu.PrefetchScalarGridSpec(
            num_scalar_prefetch=0,
            grid=grid,
            in_specs=in_specs,
            out_specs=pl.BlockSpec((tm, tn), lambda i, j: (i, j)),
        ),
        compiler_params=pltpu.CompilerParams(
            # Both grid axes are independent tiles of the output -> parallel
            # (lets Mosaic shard across both TensorCores on v7x).
            dimension_semantics=("parallel", "parallel"),
        ),
        cost_estimate=pl.CostEstimate(
            flops=2 * B * K * N,
            transcendentals=0,
            bytes_accessed=bytes_accessed,
        ),
    )(*inputs)


def info_reference(x, weight, bias):
    # Eval-mode reference: Linear -> ReLU -> (Dropout == identity)
    return jnp.maximum(x @ weight.T + bias, 0.0)


if __name__ == "__main__":
    key = jax.random.PRNGKey(0)
    k_x, k_w, k_b, k_drop = jax.random.split(key, 4)

    batch = 8
    input_size = 128

    x = jax.random.normal(k_x, (batch, input_size), dtype=jnp.float32)
    # Deterministic parameter init (PyTorch Linear-like uniform scale).
    limit = 1.0 / jnp.sqrt(jnp.float32(input_size))
    weight = jax.random.uniform(
        k_w, (input_size, input_size), minval=-limit, maxval=limit,
        dtype=jnp.float32)
    bias = jax.random.uniform(
        k_b, (input_size,), minval=-limit, maxval=limit, dtype=jnp.float32)

    # Eval mode (dropout is identity) -> deterministic, checkable.
    out = info_forward(x, weight, bias, dropout_rate=0.5, training=False)
    out = jax.block_until_ready(out)

    ref = info_reference(x, weight, bias)
    assert out.shape == (batch, input_size)
    assert jnp.allclose(out, ref, atol=1e-5, rtol=1e-5)

    # Training mode (stochastic dropout via host-side mask) also runs and is
    # consistent with the reference on the kept elements.
    out_train = jax.block_until_ready(
        info_forward(x, weight, bias, dropout_rate=0.5, training=True,
                     key=k_drop))
    assert out_train.shape == (batch, input_size)
    assert bool(jnp.all(jnp.isfinite(out_train)))
    # Every element is either 0 (dropped) or 2x the eval output (kept, p=0.5).
    kept = out_train != 0.0
    assert bool(jnp.allclose(out_train[kept], 2.0 * ref[kept], atol=1e-5, rtol=1e-5))

    print("KERNEL_OK")
</pallas_src>

<mosaic_0001>
module attributes {stable_mosaic.version = 11 : i64} {
  func.func @_info_kernel(%arg0: i32, %arg1: i32, %arg2: memref<8x128xf32, #tpu.memory_space<vmem>>, %arg3: memref<128x128xf32, #tpu.memory_space<vmem>>, %arg4: memref<1x128xf32, #tpu.memory_space<vmem>>, %arg5: memref<8x128xf32, #tpu.memory_space<vmem>>) attributes {dimension_semantics = [#tpu.dimension_semantics<parallel>, #tpu.dimension_semantics<parallel>], iteration_bounds = array<i64: 1, 1>, scalar_prefetch = 0 : i64, scratch_operands = 0 : i64, tpu.core_type = #tpu.core_type<tc>, window_params = [{transform_indices = @transform_0, window_bounds = array<i64: 8, 128>}, {transform_indices = @transform_1, window_bounds = array<i64: 128, 128>}, {transform_indices = @transform_2, window_bounds = array<i64: 1, 128>}, {transform_indices = @transform_3, window_bounds = array<i64: 8, 128>}]} {
    %c0 = arith.constant 0 : index
    %c0_0 = arith.constant 0 : index
    %0 = vector.load %arg2[%c0, %c0_0] : memref<8x128xf32, #tpu.memory_space<vmem>>, vector<8x128xf32>
    %c0_1 = arith.constant 0 : index
    %c0_2 = arith.constant 0 : index
    %1 = vector.load %arg3[%c0_1, %c0_2] : memref<128x128xf32, #tpu.memory_space<vmem>>, vector<128x128xf32>
    %cst = arith.constant dense<0.000000e+00> : vector<8x128xf32>
    %2 = tpu.matmul %0, %1, %cst {dimension_numbers = #tpu.dot_dimension_numbers<[1], [1], [0], [0], [0, 0, 1, 0], [], []>} : vector<8x128xf32>, vector<128x128xf32>, vector<8x128xf32> -> vector<8x128xf32>
    %c0_3 = arith.constant 0 : index
    %c0_4 = arith.constant 0 : index
    %3 = vector.load %arg4[%c0_3, %c0_4] : memref<1x128xf32, #tpu.memory_space<vmem>>, vector<1x128xf32>
    %4 = vector.broadcast %3 : vector<1x128xf32> to vector<8x128xf32>
    %5 = arith.addf %2, %4 : vector<8x128xf32>
    %cst_5 = arith.constant 0.000000e+00 : f32
    %6 = vector.broadcast %cst_5 : f32 to vector<8x128xf32>
    %7 = arith.maximumf %5, %6 : vector<8x128xf32>
    %c0_6 = arith.constant 0 : index
    %c0_7 = arith.constant 0 : index
    %8 = vector.load %arg5[%c0_6, %c0_7] : memref<8x128xf32, #tpu.memory_space<vmem>>, vector<8x128xf32>
    tpu.vector_store %arg5[%c0_6, %c0_7], %7 {strides = array<i32>} : memref<8x128xf32, #tpu.memory_space<vmem>>, vector<8x128xf32>,
    return
  }
  func.func @transform_0(%arg0: i32, %arg1: i32) -> (i32, i32) {
    %c0_i32 = arith.constant 0 : i32
    %c0_i32_0 = arith.constant 0 : i32
    return %arg0, %c0_i32 : i32, i32
  }
  func.func @transform_1(%arg0: i32, %arg1: i32) -> (i32, i32) {
    %c0_i32 = arith.constant 0 : i32
    %c0_i32_0 = arith.constant 0 : i32
    return %arg1, %c0_i32 : i32, i32
  }
  func.func @transform_2(%arg0: i32, %arg1: i32) -> (i32, i32) {
    %c0_i32 = arith.constant 0 : i32
    %c0_i32_0 = arith.constant 0 : i32
    return %c0_i32, %arg1 : i32, i32
  }
  func.func @transform_3(%arg0: i32, %arg1: i32) -> (i32, i32) {
    %c0_i32 = arith.constant 0 : i32
    return %arg0, %arg1 : i32, i32
  }
}

</mosaic_0001>

<llo_original>
// kernel: tpu_custom_call.1
$region0: #{tpu_custom_call.1}
  #allocation0 [shape = 'u32[]', space=smem, size = 0x4, offset = 0x4, fixed_abs, tag = 'smem constant byte address 0x4 - core index']
  #allocation1 [shape = 'u32[72,128]{1,0:T(1,128)}', space=vmem, size = 0x9000, scoped, tag = 'internal scratch']
  %s0 = inlined_call_operand.hbm [shape: f32[8,128], index: 0, kind: input, shape index: {}]
  %s1 = inlined_call_operand.hbm [shape: f32[128,128], index: 1, kind: input, shape index: {}]
  %s2 = inlined_call_operand.vmem [shape: f32[1,128], index: 2, kind: input, shape index: {}]
  %s3 = inlined_call_operand.hbm [shape: f32[8,128], index: 3, kind: output, shape index: {}]
  %s4 = sld [smem:[#allocation0]]
  $region30: #{tpu_custom_call.1} parent=0
    _
  %s6 = ssub.s32 1, %s4
  %s7 = scalar_select 0, %s6, %s4
  $region1: #{tpu_custom_call.1} parent=0
    #allocation2 [shape = 'u8[4096]{0}', space=vmem, size = 0x1000, scoped, tag = 'input window, operand 0, single buffered']
    #allocation3 [shape = 's32[1]{0}', space=sflag, size = 0x4, scoped, tag = 'scoped memory for tpu_custom_call.1']
    #allocation4 [shape = 's32[1]{0}', space=sflag, size = 0x4, scoped, tag = 'scoped memory for tpu_custom_call.1']
    #allocation5 [shape = 'u8[65536]{0}', space=vmem, size = 0x10000, scoped, tag = 'input window, operand 1, single buffered']
    #allocation6 [shape = 's32[1]{0}', space=sflag, size = 0x4, scoped, tag = 'scoped memory for tpu_custom_call.1']
    #allocation7 [shape = 'u8[4096]{0}', space=vmem, size = 0x1000, scoped, tag = 'output window, operand 0, single buffered']
    %8 = vsyncpa [#allocation3], 0
    %9 = vsyncpa [#allocation6], 0
    %10 = vsyncpa [#allocation4], 0
    // Predicated region
    $region2: #{tpu_custom_call.1} parent=1 // pred_check
      _
    $region3: #{tpu_custom_call.1} parent=1 // pred_check_branch
      %12 = sbr.rel (0) target = $region5
    $region4: #{tpu_custom_call.1} parent=1 // pred_region
      %14 = vsyncadd [#allocation3], 0
      %s16 = sshll.u32 %s0, 4
      %s17 = int_to_ptr.hbm [resolvable:$true] %s16
      %s18 = sshll.u32 [#allocation2], 4
      %s19 = int_to_ptr.vmem [resolvable:$true] %s18
      %21 = dma.hbm_to_vmem [thread:$0]  %s17, 128, %s19, [#allocation3]
    $region5: #{tpu_custom_call.1} parent=1 // pred_fallthru
      _
    // Predicated region
    $region6: #{tpu_custom_call.1} parent=1 // pred_check
      _
    $region7: #{tpu_custom_call.1} parent=1 // pred_check_branch
      %23 = sbr.rel (0) target = $region9
    $region8: #{tpu_custom_call.1} parent=1 // pred_region
      %25 = vsyncadd [#allocation6], 0
      %s26 = sshll.u32 %s1, 4
      %s27 = int_to_ptr.hbm [resolvable:$true] %s26
      %s28 = sshll.u32 [#allocation5], 4
      %s29 = int_to_ptr.vmem [resolvable:$true] %s28
      %34 = dma.hbm_to_vmem [thread:$0]  %s27, 2048, %s29, [#allocation6], 128, 128, 8
    $region9: #{tpu_custom_call.1} parent=1 // pred_fallthru
      _
    // Predicated region
    $region10: #{tpu_custom_call.1} parent=1 // pred_check
      _
    $region11: #{tpu_custom_call.1} parent=1 // pred_check_branch
      %36 = sbr.rel (0) target = $region13
    $region12: #{tpu_custom_call.1} parent=1 // pred_region
      _
    $region13: #{tpu_custom_call.1} parent=1 // pred_fallthru
      _
    // Predicated region
    $region14: #{tpu_custom_call.1} parent=1 // pred_check
      _
    $region15: #{tpu_custom_call.1} parent=1 // pred_check_branch
      %38 = sbr.rel (0) target = $region17
    $region16: #{tpu_custom_call.1} parent=1 // pred_region
      %40 = dma.done [#allocation3], 128
    $region17: #{tpu_custom_call.1} parent=1 // pred_fallthru
      _
    // Predicated region
    $region18: #{tpu_custom_call.1} parent=1 // pred_check
      _
    $region19: #{tpu_custom_call.1} parent=1 // pred_check_branch
      %42 = sbr.rel (0) target = $region21
    $region20: #{tpu_custom_call.1} parent=1 // pred_region
      %44 = dma.done [#allocation6], 2048
    $region21: #{tpu_custom_call.1} parent=1 // pred_fallthru
      _
    %v45 = vld [vmem:[#allocation2] sm:$0xff]
    %v46 = vld [vmem:[#allocation5] sm:$0xff]
    %v47 = vld [vmem:[#allocation5 + $0x8] sm:$0xff]
    %v48 = vld [vmem:[#allocation5 + $0x10] sm:$0xff]
    %v49 = vld [vmem:[#allocation5 + $0x18] sm:$0xff]
    %v50 = vld [vmem:[#allocation5 + $0x20] sm:$0xff]
    %v51 = vld [vmem:[#allocation5 + $0x28] sm:$0xff]
    %v52 = vld [vmem:[#allocation5 + $0x30] sm:$0xff]
    %v53 = vld [vmem:[#allocation5 + $0x38] sm:$0xff]
    %v54 = vld [vmem:[#allocation5 + $0x40] sm:$0xff]
    %v55 = vld [vmem:[#allocation5 + $0x48] sm:$0xff]
    %v56 = vld [vmem:[#allocation5 + $0x50] sm:$0xff]
    %v57 = vld [vmem:[#allocation5 + $0x58] sm:$0xff]
    %v58 = vld [vmem:[#allocation5 + $0x60] sm:$0xff]
    %v59 = vld [vmem:[#allocation5 + $0x68] sm:$0xff]
    %v60 = vld [vmem:[#allocation5 + $0x70] sm:$0xff]
    %v61 = vld [vmem:[#allocation5 + $0x78] sm:$0xff]
    %v62 = vld [vmem:[%s2] sm:$0x1]
    %v64 = vperm.slane %v62, 0
    %66 = vmatpush.xpose.msra.mxu0 %v61
    %67 = vmatpush.xpose.msra.mxu0 %v60
    %68 = vmatpush.xpose.msra.mxu0 %v59
    %69 = vmatpush.xpose.msra.mxu0 %v58
    %70 = vmatpush.xpose.msra.mxu0 %v57
    %71 = vmatpush.xpose.msra.mxu0 %v56
    %72 = vmatpush.xpose.msra.mxu0 %v55
    %73 = vmatpush.xpose.msra.mxu0 %v54
    %74 = vmatpush.xpose.msra.mxu0 %v53
    %75 = vmatpush.xpose.msra.mxu0 %v52
    %76 = vmatpush.xpose.msra.mxu0 %v51
    %77 = vmatpush.xpose.msra.mxu0 %v50
    %78 = vmatpush.xpose.msra.mxu0 %v49
    %79 = vmatpush.xpose.msra.mxu0 %v48
    %80 = vmatpush.xpose.msra.mxu0 %v47
    %81 = vmatpush.xpose.msra.mxu0 %v46
    %82 = vmatmul.f32.gmra.mxu0 %v45
    %v83 = vpop.f32.mrf.mxu0
    %v84 = vadd.f32 %v64, %v83
    %85 = vdwg.mxu0
    %v86 = vmax.f32 %v84, 0.0
    %87 = vst [vmem:[#allocation7] sm:$0xff] %v86
    // Predicated region
    $region22: #{tpu_custom_call.1} parent=1 // pred_check
      _
    $region23: #{tpu_custom_call.1} parent=1 // pred_check_branch
      %89 = sbr.rel (0) target = $region25
    $region24: #{tpu_custom_call.1} parent=1 // pred_region
      %91 = vsyncadd [#allocation4], 0
      %s93 = sshll.u32 [#allocation7], 4
      %s94 = int_to_ptr.vmem [resolvable:$true] %s93
      %s95 = sshll.u32 %s3, 4
      %s96 = int_to_ptr.hbm [resolvable:$true] %s95
      %98 = dma.vmem_to_hbm [thread:$0]  %s94, 128, %s96, [#allocation4]
    $region25: #{tpu_custom_call.1} parent=1 // pred_fallthru
      _
    // Predicated region
    $region26: #{tpu_custom_call.1} parent=1 // pred_check
      _
    $region27: #{tpu_custom_call.1} parent=1 // pred_check_branch
      %100 = sbr.rel (0) target = $region29
    $region28: #{tpu_custom_call.1} parent=1 // pred_region
      %102 = dma.done [#allocation4], 128
    $region29: #{tpu_custom_call.1} parent=1 // pred_fallthru
      _
    %103 = vsyncpa [#allocation3], 1
    %104 = vsyncpa [#allocation6], 1
    %105 = vsyncpa [#allocation4], 1

</llo_original>
